<compile_context>
chip_gen: v5e
topology: v5e:2x2
jax: 0.10.0
libtpu: 0.0.40
codegen_flags: <defaults>
</compile_context>

<pallas_src>
import functools

import jax
import jax.numpy as jnp
from jax.experimental import pallas as pl
from jax.experimental.pallas import tpu as pltpu


def _round_up(x, m):
    return ((x + m - 1) // m) * m


def _projection_matrix(skewness, atoms, v_max, v_min):
    """(atoms, atoms) matrix P such that skewed_anchor = anchor @ P.

    Row j of P scatters anchor[:, j] onto columns l[j] and u[j] with weights
    (u - b) and (b - l), reproducing the torch index_add_ projection for a
    uniform skewness fill.  Computed in plain JAX (hoisted out of the kernel),
    always in f32 (float-equality tests below need full precision).
    """
    delta = (v_max - v_min) / (atoms - 1)
    supports = jnp.linspace(v_min, v_max, atoms).astype(jnp.float32)
    skewness = jnp.asarray(skewness, jnp.float32)

    tz = jnp.clip(skewness + supports, v_min, v_max)
    b = (tz - v_min) / delta
    l = jnp.floor(b)
    u = jnp.ceil(b)
    # Sequential boundary adjustments, matching the torch forward:
    #   l[(u > 0) & (l == u)] -= 1   (then)   u[(l < atoms-1) & (l == u)] += 1
    l = jnp.where((u > 0.0) & (l == u), l - 1.0, l)
    u = jnp.where((l < float(atoms - 1)) & (l == u), u + 1.0, u)

    col = jax.lax.broadcasted_iota(jnp.float32, (atoms, atoms), 1)
    lc, uc, bc = l[:, None], u[:, None], b[:, None]
    proj = (jnp.where(col == lc, uc - bc, 0.0)
            + jnp.where(col == uc, bc - lc, 0.0))
    return proj.astype(jnp.float32)


def _categorical_loss_block_kernel(anchor_ref, feature_ref, proj_ref, part_ref,
                                   *, batch):
    """One batch tile: partial sum of (anchor @ P) * log(feature + 1e-16)."""
    tb, atoms = anchor_ref.shape
    i = pl.program_id(0)

    # Keep anchor/P in their native dtype so bf16 inputs use the MXU's native
    # bf16 path; accumulation is f32 via preferred_element_type.
    skewed = jnp.dot(anchor_ref[...], proj_ref[...],
                     preferred_element_type=jnp.float32)

    feature = feature_ref[...].astype(jnp.float32)
    log_feat = jnp.log(feature + 1e-16)

    # Mask tail rows of the last (partial) block.  Rows >= batch come from the
    # out-of-bounds region of the final tile (undefined contents) and must not
    # reach the reduction.  jnp.where selects (does not multiply), so NaN/Inf
    # garbage in those rows is dropped exactly.
    row = jax.lax.broadcasted_iota(jnp.int32, (tb, atoms), 0) + i * tb
    prod = jnp.where(row < batch, skewed * log_feat, 0.0)

    part_ref[0, 0] = jnp.sum(prod)


def categorical_loss(anchor, feature, skewness=0.0,
                     atoms=51, v_max=1.0, v_min=-1.0, block_batch=4096):
    """-( (anchor @ P) * log(feature + 1e-16) ).sum(-1).mean()  (RealnessGAN)."""
    batch = anchor.shape[0]
    assert anchor.shape == (batch, atoms) and feature.shape == (batch, atoms)

    # Projection matrix, cast to the MXU operand dtype (bf16 in -> bf16 P).
    proj = _projection_matrix(skewness, atoms, v_max, v_min).astype(anchor.dtype)

    # Tile selection:
    #  * multiple of 8 sublanes,
    #  * capped at block_batch (default 4096: VMEM-safe on v7x, big enough to
    #    amortize per-grid-step overhead everywhere),
    #  * chosen so there are >= 2 blocks when batch allows it (v7x megacore).
    cap = max(8, _round_up(block_batch, 8))
    tb = max(8, min(cap, _round_up(pl.cdiv(batch, 2), 8)))
    num_blocks = pl.cdiv(batch, tb)

    a_bytes = jnp.dtype(anchor.dtype).itemsize
    f_bytes = jnp.dtype(feature.dtype).itemsize
    cost = pl.CostEstimate(
        flops=2 * batch * atoms * atoms + 3 * batch * atoms,
        transcendentals=batch * atoms,
        bytes_accessed=(batch * atoms * (a_bytes + f_bytes)
                        + atoms * atoms * a_bytes + num_blocks * 4),
    )

    partials = pl.pallas_call(
        functools.partial(_categorical_loss_block_kernel, batch=batch),
        out_shape=jax.ShapeDtypeStruct((num_blocks, 1), jnp.float32),
        grid=(num_blocks,),
        in_specs=[
            pl.BlockSpec((tb, atoms), lambda i: (i, 0)),        # anchor tile
            pl.BlockSpec((tb, atoms), lambda i: (i, 0)),        # feature tile
            pl.BlockSpec((atoms, atoms), lambda i: (0, 0)),     # P (resident)
        ],
        out_specs=pl.BlockSpec((1, 1), lambda i: (i, 0),
                               memory_space=pltpu.MemorySpace.SMEM),
        compiler_params=pltpu.CompilerParams(
            dimension_semantics=("parallel",)),
        cost_estimate=cost,
    )(anchor, feature, proj)

    # Finalize with the GLOBAL batch size (mean semantics independent of tiling).
    return -jnp.sum(partials) / batch


def _reference_loss(anchor, feature, skewness, atoms=51, v_max=1.0, v_min=-1.0):
    """Plain-JAX reference mirroring the torch forward, for verification."""
    anchor = anchor.astype(jnp.float32)
    feature = feature.astype(jnp.float32)
    batch = feature.shape[0]
    delta = (v_max - v_min) / (atoms - 1)
    supports = jnp.linspace(v_min, v_max, atoms)
    tz = jnp.clip(skewness + supports, v_min, v_max)
    b = (tz - v_min) / delta
    l = jnp.floor(b)
    u = jnp.ceil(b)
    l = jnp.where((u > 0) & (l == u), l - 1.0, l)
    u = jnp.where((l < atoms - 1) & (l == u), u + 1.0, u)
    li = l.astype(jnp.int32)
    ui = u.astype(jnp.int32)
    skewed = jnp.zeros((batch, atoms), jnp.float32)
    skewed = skewed.at[:, li].add(anchor * (u - b)[None, :])
    skewed = skewed.at[:, ui].add(anchor * (b - l)[None, :])
    return -(skewed * jnp.log(feature + 1e-16)).sum(-1).mean()


if __name__ == "__main__":
    atoms = 51
    skewness = 0.1
    key = jax.random.PRNGKey(0)

    # Case 1: small batch (single grid block), f32.
    batch = 8
    k1, k2, key = jax.random.split(key, 3)
    anchor = jax.nn.softmax(jax.random.normal(k1, (batch, atoms)), axis=-1)
    feature = jax.nn.softmax(jax.random.normal(k2, (batch, atoms)), axis=-1)
    loss = jax.block_until_ready(
        categorical_loss(anchor, feature, skewness, atoms=atoms))
    ref = _reference_loss(anchor, feature, skewness, atoms=atoms)
    assert jnp.allclose(loss, ref, rtol=1e-5, atol=1e-5), (loss, ref)

    # Case 2: batch not divisible by the tile -> exercises multi-block grid,
    # in-kernel tail masking (no padding copies), and partial-sum accumulation.
    batch2 = 20
    k3, k4, key = jax.random.split(key, 3)
    anchor2 = jax.nn.softmax(jax.random.normal(k3, (batch2, atoms)), axis=-1)
    feature2 = jax.nn.softmax(jax.random.normal(k4, (batch2, atoms)), axis=-1)
    loss2 = jax.block_until_ready(
        categorical_loss(anchor2, feature2, skewness, atoms=atoms,
                         block_batch=8))
    ref2 = _reference_loss(anchor2, feature2, skewness, atoms=atoms)
    assert jnp.allclose(loss2, ref2, rtol=1e-5, atol=1e-5), (loss2, ref2)

    # Case 3: bf16 inputs -> native bf16 MXU path (P cast to bf16), loose tol
    # because projection weights pick up ~2^-9 relative error in bf16.
    batch3 = 24
    k5, k6, key = jax.random.split(key, 3)
    anchor3 = jax.nn.softmax(
        jax.random.normal(k5, (batch3, atoms)), axis=-1).astype(jnp.bfloat16)
    feature3 = jax.nn.softmax(
        jax.random.normal(k6, (batch3, atoms)), axis=-1).astype(jnp.bfloat16)
    loss3 = jax.block_until_ready(
        categorical_loss(anchor3, feature3, skewness, atoms=atoms,
                         block_batch=16))
    ref3 = _reference_loss(anchor3, feature3, skewness, atoms=atoms)
    assert jnp.allclose(loss3, ref3, rtol=2e-2, atol=2e-2), (loss3, ref3)

    print("KERNEL_OK")
</pallas_src>

<mosaic_0001>
module attributes {stable_mosaic.version = 11 : i64} {
  func.func @_categorical_loss_block_kernel(%arg0: i32, %arg1: memref<8x51xf32, #tpu.memory_space<vmem>>, %arg2: memref<8x51xf32, #tpu.memory_space<vmem>>, %arg3: memref<51x51xf32, #tpu.memory_space<vmem>>, %arg4: memref<1x1xf32, #tpu.memory_space<smem>>) attributes {dimension_semantics = [#tpu.dimension_semantics<parallel>], iteration_bounds = array<i64: 1>, scalar_prefetch = 0 : i64, scratch_operands = 0 : i64, tpu.core_type = #tpu.core_type<tc>, window_params = [{transform_indices = @transform_0, window_bounds = array<i64: 8, 51>}, {transform_indices = @transform_1, window_bounds = array<i64: 8, 51>}, {pipeline_mode = #tpu.pipeline_mode<synchronous>, transform_indices = @transform_2, window_bounds = array<i64: 51, 51>}, {transform_indices = @transform_3, window_bounds = array<i64: 1, 1>}]} {
    %c0 = arith.constant 0 : index
    %c0_0 = arith.constant 0 : index
    %0 = vector.load %arg1[%c0, %c0_0] : memref<8x51xf32, #tpu.memory_space<vmem>>, vector<8x51xf32>
    %c0_1 = arith.constant 0 : index
    %c0_2 = arith.constant 0 : index
    %1 = vector.load %arg3[%c0_1, %c0_2] : memref<51x51xf32, #tpu.memory_space<vmem>>, vector<51x51xf32>
    %cst = arith.constant dense<0.000000e+00> : vector<8x51xf32>
    %2 = tpu.matmul %0, %1, %cst {dimension_numbers = #tpu.dot_dimension_numbers<[1], [0], [0], [1], [0, 0, 1, 1], [], []>} : vector<8x51xf32>, vector<51x51xf32>, vector<8x51xf32> -> vector<8x51xf32>
    %c0_3 = arith.constant 0 : index
    %c0_4 = arith.constant 0 : index
    %3 = vector.load %arg2[%c0_3, %c0_4] : memref<8x51xf32, #tpu.memory_space<vmem>>, vector<8x51xf32>
    %cst_5 = arith.constant 1.000000e-16 : f32
    %4 = vector.broadcast %cst_5 : f32 to vector<8x51xf32>
    %5 = arith.addf %3, %4 : vector<8x51xf32>
    %6 = math.log %5 : vector<8x51xf32>
    %7 = tpu.iota {dimensions = array<i32: 0>} : vector<8x51xi32>
    %c8_i32 = arith.constant 8 : i32
    %8 = arith.muli %arg0, %c8_i32 : i32
    %9 = vector.broadcast %8 : i32 to vector<8x51xi32>
    %10 = arith.addi %7, %9 : vector<8x51xi32>
    %c8_i32_6 = arith.constant 8 : i32
    %11 = vector.broadcast %c8_i32_6 : i32 to vector<8x51xi32>
    %12 = arith.cmpi slt, %10, %11 : vector<8x51xi32>
    %13 = arith.mulf %2, %6 : vector<8x51xf32>
    %cst_7 = arith.constant 0.000000e+00 : f32
    %14 = vector.broadcast %cst_7 : f32 to vector<8x51xf32>
    %15 = arith.select %12, %13, %14 : vector<8x51xi1>, vector<8x51xf32>
    %16 = vector.shape_cast %15 : vector<8x51xf32> to vector<1x8x51xf32>
    %cst_8 = arith.constant dense<0.000000e+00> : vector<1xf32>
    %17 = vector.multi_reduction <add>, %16, %cst_8 [1, 2] : vector<1x8x51xf32> to vector<1xf32>
    %18 = vector.shape_cast %17 : vector<1xf32> to vector<1x1x1xf32>
    %19 = vector.extract %18[0, 0, 0] : f32 from vector<1x1x1xf32>
    %c0_9 = arith.constant 0 : index
    %c0_10 = arith.constant 0 : index
    %20 = memref.load %arg4[%c0_9, %c0_10] : memref<1x1xf32, #tpu.memory_space<smem>>
    memref.store %19, %arg4[%c0_9, %c0_10] : memref<1x1xf32, #tpu.memory_space<smem>>
    return
  }
  func.func @transform_0(%arg0: i32) -> (i32, i32) {
    %c0_i32 = arith.constant 0 : i32
    %c0_i32_0 = arith.constant 0 : i32
    return %arg0, %c0_i32 : i32, i32
  }
  func.func @transform_1(%arg0: i32) -> (i32, i32) {
    %c0_i32 = arith.constant 0 : i32
    %c0_i32_0 = arith.constant 0 : i32
    return %arg0, %c0_i32 : i32, i32
  }
  func.func @transform_2(%arg0: i32) -> (i32, i32) {
    %c0_i32 = arith.constant 0 : i32
    %c0_i32_0 = arith.constant 0 : i32
    %c0_i32_1 = arith.constant 0 : i32
    return %c0_i32, %c0_i32_0 : i32, i32
  }
  func.func @transform_3(%arg0: i32) -> (i32, i32) {
    %c0_i32 = arith.constant 0 : i32
    %c0_i32_0 = arith.constant 0 : i32
    return %arg0, %c0_i32 : i32, i32
  }
}

</mosaic_0001>

<llo_original>
// kernel: tpu_custom_call.1
$region0: #{tpu_custom_call.1}
  #allocation0 [shape = 'u32[]', space=smem, size = 0x4, offset = 0x4, fixed_abs, tag = 'smem constant byte address 0x4 - core index']
  #allocation1 [shape = 'u32[72,128]{1,0:T(1,128)}', space=vmem, size = 0x9000, scoped, tag = 'internal scratch']
  %s0 = inlined_call_operand.hbm [shape: f32[8,51], index: 0, kind: input, shape index: {}]
  %s1 = inlined_call_operand.hbm [shape: f32[8,51], index: 1, kind: input, shape index: {}]
  %s2 = inlined_call_operand.hbm [shape: f32[51,51], index: 2, kind: input, shape index: {}]
  %s3 = inlined_call_operand.hbm [shape: f32[1,1], index: 3, kind: output, shape index: {}]
  %s4 = sld [smem:[#allocation0]]
  $region34: #{tpu_custom_call.1} parent=0
    _
  %s6 = ssub.s32 1, %s4
  %s7 = scalar_select 0, %s6, %s4
  $region1: #{tpu_custom_call.1} parent=0
    #allocation2 [shape = 'u8[4096]{0}', space=vmem, size = 0x1000, scoped, tag = 'input window, operand 0, single buffered']
    #allocation3 [shape = 's32[1]{0}', space=sflag, size = 0x4, scoped, tag = 'scoped memory for tpu_custom_call.1']
    #allocation4 [shape = 's32[1]{0}', space=sflag, size = 0x4, scoped, tag = 'scoped memory for tpu_custom_call.1']
    #allocation5 [shape = 'u8[4096]{0}', space=vmem, size = 0x1000, scoped, tag = 'input window, operand 1, single buffered']
    #allocation6 [shape = 's32[1]{0}', space=sflag, size = 0x4, scoped, tag = 'scoped memory for tpu_custom_call.1']
    #allocation7 [shape = 'u8[28672]{0}', space=vmem, size = 0x7000, scoped, tag = 'input window, operand 2, single buffered']
    #allocation8 [shape = 'u8[512]{0}', space=smem, size = 0x200, scoped, tag = 'output window, operand 0, single buffered']
    %8 = vsyncpa [#allocation3], 0
    %9 = vsyncpa [#allocation6], 0
    %10 = vsyncpa [#allocation4], 0
    // Predicated region
    $region2: #{tpu_custom_call.1} parent=1 // pred_check
      _
    $region3: #{tpu_custom_call.1} parent=1 // pred_check_branch
      %12 = sbr.rel (0) target = $region5
    $region4: #{tpu_custom_call.1} parent=1 // pred_region
      %14 = vsyncadd [#allocation3], 0
      %s16 = sshll.u32 %s0, 4
      %s17 = int_to_ptr.hbm [resolvable:$true] %s16
      %s18 = sshll.u32 [#allocation2], 4
      %s19 = int_to_ptr.vmem [resolvable:$true] %s18
      %21 = dma.hbm_to_vmem [thread:$0]  %s17, 128, %s19, [#allocation3]
    $region5: #{tpu_custom_call.1} parent=1 // pred_fallthru
      _
    // Predicated region
    $region6: #{tpu_custom_call.1} parent=1 // pred_check
      _
    $region7: #{tpu_custom_call.1} parent=1 // pred_check_branch
      %23 = sbr.rel (0) target = $region9
    $region8: #{tpu_custom_call.1} parent=1 // pred_region
      %25 = vsyncadd [#allocation6], 0
      %s27 = sshll.u32 %s1, 4
      %s28 = int_to_ptr.hbm [resolvable:$true] %s27
      %s29 = sshll.u32 [#allocation5], 4
      %s30 = int_to_ptr.vmem [resolvable:$true] %s29
      %32 = dma.hbm_to_vmem [thread:$0]  %s28, 128, %s30, [#allocation6]
    $region9: #{tpu_custom_call.1} parent=1 // pred_fallthru
      _
    // Predicated region
    $region10: #{tpu_custom_call.1} parent=1 // pred_check
      _
    $region11: #{tpu_custom_call.1} parent=1 // pred_check_branch
      %34 = sbr.rel (0) target = $region13
    $region12: #{tpu_custom_call.1} parent=1 // pred_region
      %36 = vsyncadd [#allocation6], 0
      %s37 = sshll.u32 %s2, 4
      %s38 = int_to_ptr.hbm [resolvable:$true] %s37
      %s39 = sshll.u32 [#allocation7], 4
      %s40 = int_to_ptr.vmem [resolvable:$true] %s39
      %45 = dma.hbm_to_vmem [thread:$0]  %s38, 896, %s40, [#allocation6], 128, 128, 8
    $region13: #{tpu_custom_call.1} parent=1 // pred_fallthru
      _
    // Predicated region
    $region14: #{tpu_custom_call.1} parent=1 // pred_check
      _
    $region15: #{tpu_custom_call.1} parent=1 // pred_check_branch
      %47 = sbr.rel (0) target = $region17
    $region16: #{tpu_custom_call.1} parent=1 // pred_region
      %49 = dma.done [#allocation3], 128
    $region17: #{tpu_custom_call.1} parent=1 // pred_fallthru
      _
    // Predicated region
    $region18: #{tpu_custom_call.1} parent=1 // pred_check
      _
    $region19: #{tpu_custom_call.1} parent=1 // pred_check_branch
      %51 = sbr.rel (0) target = $region21
    $region20: #{tpu_custom_call.1} parent=1 // pred_region
      %53 = dma.done [#allocation6], 128
    $region21: #{tpu_custom_call.1} parent=1 // pred_fallthru
      _
    // Predicated region
    $region22: #{tpu_custom_call.1} parent=1 // pred_check
      _
    $region23: #{tpu_custom_call.1} parent=1 // pred_check_branch
      %55 = sbr.rel (0) target = $region25
    $region24: #{tpu_custom_call.1} parent=1 // pred_region
      %57 = dma.done [#allocation6], 896
    $region25: #{tpu_custom_call.1} parent=1 // pred_fallthru
      _
    %v58 = vld [vmem:[#allocation2] sm:$0xff]
    %v59 = vld [vmem:[#allocation7] sm:$0xff]
    %v60 = vld [vmem:[#allocation7 + $0x8] sm:$0xff]
    %v61 = vld [vmem:[#allocation7 + $0x10] sm:$0xff]
    %v62 = vld [vmem:[#allocation7 + $0x18] sm:$0xff]
    %v63 = vld [vmem:[#allocation7 + $0x20] sm:$0xff]
    %v64 = vld [vmem:[#allocation7 + $0x28] sm:$0xff]
    %v65 = vld [vmem:[#allocation7 + $0x30] sm:$0x7]
    %vm66 = vcmask 416768
    %v68 = vsel %vm66, %v58, 0
    %vm70 = vcmask 1042432
    %v72 = vsel %vm70, %v65, 0
    %74 = vmatpush.msra.mxu0 0.0
    %75 = vmatpush.msra.mxu0 0.0
    %76 = vmatpush.msra.mxu0 0.0
    %77 = vmatpush.msra.mxu0 0.0
    %78 = vmatpush.msra.mxu0 0.0
    %79 = vmatpush.msra.mxu0 0.0
    %80 = vmatpush.msra.mxu0 0.0
    %81 = vmatpush.msra.mxu0 0.0
    %82 = vmatpush.msra.mxu0 0.0
    %83 = vmatpush.msra.mxu0 %v72
    %84 = vmatpush.msra.mxu0 %v64
    %85 = vmatpush.msra.mxu0 %v63
    %86 = vmatpush.msra.mxu0 %v62
    %87 = vmatpush.msra.mxu0 %v61
    %88 = vmatpush.msra.mxu0 %v60
    %89 = vmatpush.msra.mxu0 %v59
    %90 = vmatmul.f32.gmra.mxu0 %v68
    %v91 = vpop.f32.mrf.mxu0
    %v92 = vadd.f32 0.0, %v91
    %93 = vdwg.mxu0
    %v94 = vld [vmem:[#allocation5] sm:$0xff]
    %v95 = vadd.f32 %v94, 1e-16
    %v96 = vlog2.pop %v95
    %v97 = vmul.f32 %v96, 0.6931472
    %v98 = vlaneseq
    %v99 = vshrl.u32 %v98, 7
    %s100 = smul.u32 0, 8
    %v101 = vstv %s100
    %v102 = vadd.s32 %v99, %v101
    %vm103 = vcmp.lt.s32.totalorder %v102, 8
    %v104 = vmul.f32 %v92, %v97
    %v105 = vsel %vm103, %v104, 0.0
    %v106 = vsel %vm66, %v105, 0.0
    %107 = vadd.xlane.f32.xlu0 %v106
    %v108 = vpop.xlane.xlu0 %107
    %v109 = vrot.slane %v108, 4
    %v110 = vadd.f32 %v108, %v109
    %v111 = vrot.slane %v110, 2
    %v112 = vadd.f32 %v110, %v111
    %v113 = vrot.slane %v112, 1
    %v114 = vadd.f32 %v112, %v113
    %s115 = vtos %v114
    %s116 = scalar_lea.smem [#allocation8], 0
    %117 = sst [smem:[%s116]] %s115
    // Predicated region
    $region26: #{tpu_custom_call.1} parent=1 // pred_check
      _
    $region27: #{tpu_custom_call.1} parent=1 // pred_check_branch
      %119 = sbr.rel (0) target = $region29
    $region28: #{tpu_custom_call.1} parent=1 // pred_region
      %121 = vsyncadd [#allocation4], 0
      %s123 = sshll.u32 %s3, 4
      %s124 = int_to_ptr.hbm [resolvable:$true] %s123
      %126 = dma.smem_to_hbm [#allocation8], 16, %s124, [#allocation4]
    $region29: #{tpu_custom_call.1} parent=1 // pred_fallthru
      _
    // Predicated region
    $region30: #{tpu_custom_call.1} parent=1 // pred_check
      _
    $region31: #{tpu_custom_call.1} parent=1 // pred_check_branch
      %128 = sbr.rel (0) target = $region33
    $region32: #{tpu_custom_call.1} parent=1 // pred_region
      %130 = dma.done [#allocation4], 16
    $region33: #{tpu_custom_call.1} parent=1 // pred_fallthru
      _
    %131 = sfence
    %132 = vsyncpa [#allocation3], 1
    %133 = vsyncpa [#allocation6], 1
    %134 = vsyncpa [#allocation4], 1

</llo_original>
